<compile_context>
chip_gen: v6e
topology: v6e:2x2x1
jax: 0.10.0
libtpu: 0.0.40
codegen_flags: <defaults>
</compile_context>

<pallas_src>
import jax
import jax.numpy as jnp
from jax.experimental import pallas as pl
from jax.experimental.pallas import tpu as pltpu


_LANE_CANDIDATES = (2048, 1024, 512, 256, 128)


def _glu_kernel(x_ref, o_ref):
    x = x_ref[...].astype(jnp.float32)
    # x * sigmoid(x) == 0.5 * x * (1 + tanh(x / 2)):
    # a single EUP transcendental per vreg; muls/adds ride the 4 VALU slots.
    y = 0.5 * x * (1.0 + jnp.tanh(0.5 * x))
    o_ref[...] = y.astype(o_ref.dtype)


def _round_up(a: int, b: int) -> int:
    return ((a + b - 1) // b) * b


def _glu_2d(x2d: jnp.ndarray, row_tile: int, vmem_limit_bytes: int) -> jnp.ndarray:
    rows, lanes = x2d.shape
    grid = (pl.cdiv(rows, row_tile),)
    return pl.pallas_call(
        _glu_kernel,
        out_shape=jax.ShapeDtypeStruct((rows, lanes), x2d.dtype),
        grid_spec=pltpu.PrefetchScalarGridSpec(
            num_scalar_prefetch=0,
            grid=grid,
            in_specs=[pl.BlockSpec((row_tile, lanes), lambda i: (i, 0))],
            out_specs=pl.BlockSpec((row_tile, lanes), lambda i: (i, 0)),
        ),
        compiler_params=pltpu.CompilerParams(
            dimension_semantics=("parallel",),
            vmem_limit_bytes=vmem_limit_bytes,
        ),
    )(x2d)


def glu(x: jnp.ndarray, target_block_bytes: int = 6 * 1024 * 1024) -> jnp.ndarray:
    """Elementwise x * sigmoid(x) via a Pallas TPU kernel. Any shape/layout."""
    orig_shape = x.shape
    total = int(x.size)
    if total == 0:
        return x
    itemsize = jnp.dtype(x.dtype).itemsize
    # Native sublane packing per dtype width (f32: 8, bf16: 16, 1-byte: 32).
    sublane = {4: 8, 2: 16, 1: 32}.get(itemsize, 8)

    flat = x.reshape(-1)  # reshape of a contiguous array is free (no HBM pass)

    # Lane width: largest multiple of 128 that divides the flat size exactly,
    # so stores are lane-dense and no host-side pad/slice passes are needed.
    lane_width = None
    for cand in _LANE_CANDIDATES:
        if total % cand == 0:
            lane_width = cand
            break

    padded = total
    if lane_width is None:
        # Ragged size (not a multiple of 128) — rare for real feature maps.
        if total * itemsize <= 4 * 1024 * 1024:
            # Small: one full-extent block (full-dim blocks bypass the (8,128)
            # divisibility requirement), still no pad.
            vmem_limit = min(32 * 1024 * 1024, 4 * total * itemsize + 4 * 1024 * 1024)
            out = _glu_2d(flat.reshape(1, total), 1, vmem_limit)
            return out.reshape(orig_shape)
        # TODO(synk): in-kernel lane-tail masking for large non-128-multiple
        # sizes; for now fall back to a (rare) pad + slice path.
        lane_width = 128
        rows = pl.cdiv(total, lane_width)
        padded = rows * lane_width
        flat = jnp.pad(flat, (0, padded - total))
    else:
        rows = total // lane_width

    x2d = flat.reshape(rows, lane_width)

    # Row tile: ~target_block_bytes per block, multiple of the native sublane
    # packing; capped so medium/large tensors always get >= 2 (>= 4 for large)
    # grid steps for megacore sharding and DMA/compute overlap.
    max_row_tile = max(
        sublane,
        (target_block_bytes // (lane_width * itemsize)) // sublane * sublane,
    )
    total_bytes = total * itemsize
    if total_bytes >= 8 * 1024 * 1024:
        min_steps = 4
    elif total_bytes >= 2 * 1024 * 1024:
        min_steps = 2
    else:
        min_steps = 1

    row_tile = min(max_row_tile, rows)
    if min_steps > 1:
        cap = max(sublane, _round_up(pl.cdiv(rows, min_steps), sublane))
        row_tile = min(row_tile, cap)
    if row_tile < rows:
        # Non-full blocks must respect the (sublane, 128) divisibility rule.
        row_tile = max(sublane, (row_tile // sublane) * sublane)

    block_bytes = row_tile * lane_width * itemsize
    # in + out, double-buffered by the auto-pipeline, plus headroom; explicit
    # so v5e's 16 MiB scoped default never gates the larger blocks.
    vmem_limit = min(32 * 1024 * 1024, 4 * block_bytes + 4 * 1024 * 1024)

    out2d = _glu_2d(x2d, row_tile, vmem_limit)
    out_flat = out2d.reshape(-1)
    if padded != total:
        out_flat = out_flat[:total]
    return out_flat.reshape(orig_shape)


if __name__ == "__main__":
    key = jax.random.PRNGKey(0)

    # Small shape consistent with the module's use on NCHW feature maps.
    x = jax.random.normal(key, (2, 4, 16, 16), dtype=jnp.float32)
    y = glu(x)
    jax.block_until_ready(y)
    y_ref = x * jax.nn.sigmoid(x)
    assert y.shape == x.shape
    assert jnp.allclose(y, y_ref, atol=1e-4, rtol=1e-4), (
        float(jnp.max(jnp.abs(y - y_ref)))
    )

    # A slightly larger input to exercise the multi-step (megacore) grid path.
    x2 = jax.random.normal(jax.random.PRNGKey(1), (4, 64, 64, 64), dtype=jnp.float32)
    y2 = glu(x2)
    jax.block_until_ready(y2)
    y2_ref = x2 * jax.nn.sigmoid(x2)
    assert y2.shape == x2.shape
    assert jnp.allclose(y2, y2_ref, atol=1e-4, rtol=1e-4), (
        float(jnp.max(jnp.abs(y2 - y2_ref)))
    )

    print("KERNEL_OK")
</pallas_src>

<mosaic_0001>
module attributes {stable_mosaic.version = 11 : i64} {
  func.func @_glu_kernel(%arg0: i32, %arg1: memref<1x2048xf32, #tpu.memory_space<vmem>>, %arg2: memref<1x2048xf32, #tpu.memory_space<vmem>>) attributes {dimension_semantics = [#tpu.dimension_semantics<parallel>], iteration_bounds = array<i64: 1>, scalar_prefetch = 0 : i64, scratch_operands = 0 : i64, tpu.core_type = #tpu.core_type<tc>, window_params = [{transform_indices = @transform_0, window_bounds = array<i64: 1, 2048>}, {transform_indices = @transform_1, window_bounds = array<i64: 1, 2048>}]} {
    %c0 = arith.constant 0 : index
    %c0_0 = arith.constant 0 : index
    %0 = vector.load %arg1[%c0, %c0_0] : memref<1x2048xf32, #tpu.memory_space<vmem>>, vector<1x2048xf32>
    %cst = arith.constant 5.000000e-01 : f32
    %1 = vector.broadcast %cst : f32 to vector<1x2048xf32>
    %2 = arith.mulf %1, %0 : vector<1x2048xf32>
    %cst_1 = arith.constant 5.000000e-01 : f32
    %3 = vector.broadcast %cst_1 : f32 to vector<1x2048xf32>
    %4 = arith.mulf %3, %0 : vector<1x2048xf32>
    %5 = math.tanh %4 : vector<1x2048xf32>
    %cst_2 = arith.constant 1.000000e+00 : f32
    %6 = vector.broadcast %cst_2 : f32 to vector<1x2048xf32>
    %7 = arith.addf %6, %5 : vector<1x2048xf32>
    %8 = arith.mulf %2, %7 : vector<1x2048xf32>
    %c0_3 = arith.constant 0 : index
    %c0_4 = arith.constant 0 : index
    %9 = vector.load %arg2[%c0_3, %c0_4] : memref<1x2048xf32, #tpu.memory_space<vmem>>, vector<1x2048xf32>
    tpu.vector_store %arg2[%c0_3, %c0_4], %8 {strides = array<i32>} : memref<1x2048xf32, #tpu.memory_space<vmem>>, vector<1x2048xf32>,
    return
  }
  func.func @transform_0(%arg0: i32) -> (i32, i32) {
    %c0_i32 = arith.constant 0 : i32
    %c0_i32_0 = arith.constant 0 : i32
    return %arg0, %c0_i32 : i32, i32
  }
  func.func @transform_1(%arg0: i32) -> (i32, i32) {
    %c0_i32 = arith.constant 0 : i32
    %c0_i32_0 = arith.constant 0 : i32
    return %arg0, %c0_i32 : i32, i32
  }
}

</mosaic_0001>

<llo_original>
// kernel: tpu_custom_call.1
$region0: #{tpu_custom_call.1}
  #allocation0 [shape = 'u32[]', space=smem, size = 0x4, offset = 0x4, fixed_abs, tag = 'smem constant byte address 0x4 - core index']
  #allocation1 [shape = 'u32[144,128]{1,0:T(1,128)}', space=vmem, size = 0x12000, scoped, tag = 'internal scratch']
  %s0 = inlined_call_operand.hbm [shape: f32[1,2048], index: 0, kind: input, shape index: {}]
  %s1 = inlined_call_operand.hbm [shape: f32[1,2048], index: 1, kind: output, shape index: {}]
  %s2 = sld [smem:[#allocation0]]
  $region18: #{tpu_custom_call.1} parent=0
    _
  %s4 = ssub.s32 1, %s2
  %s5 = scalar_select 0, %s4, %s2
  $region1: #{tpu_custom_call.1} parent=0
    #allocation2 [shape = 'u8[8192]{0}', space=vmem, size = 0x2000, scoped, tag = 'input window, operand 0, single buffered']
    #allocation3 [shape = 's32[1]{0}', space=sflag, size = 0x4, scoped, tag = 'scoped memory for tpu_custom_call.1']
    #allocation4 [shape = 's32[1]{0}', space=sflag, size = 0x4, scoped, tag = 'scoped memory for tpu_custom_call.1']
    #allocation5 [shape = 'u8[8192]{0}', space=vmem, size = 0x2000, scoped, tag = 'output window, operand 0, single buffered']
    %6 = vsyncpa [#allocation3], 0
    %7 = vsyncpa [#allocation4], 0
    // Predicated region
    $region2: #{tpu_custom_call.1} parent=1 // pred_check
      _
    $region3: #{tpu_custom_call.1} parent=1 // pred_check_branch
      %9 = sbr.rel (0) target = $region5
    $region4: #{tpu_custom_call.1} parent=1 // pred_region
      %s11 = ssub.s32 256, 256
      %12 = vsyncadd [#allocation3], %s11
      %s14 = sshll.u32 [#allocation2], 4
      %s15 = int_to_ptr.vmem [resolvable:$true] %s14
      %17 = dma.hbm_to_vmem [thread:$0]  %s0, 256, %s15, [#allocation3]
    $region5: #{tpu_custom_call.1} parent=1 // pred_fallthru
      _
    // Predicated region
    $region6: #{tpu_custom_call.1} parent=1 // pred_check
      _
    $region7: #{tpu_custom_call.1} parent=1 // pred_check_branch
      %19 = sbr.rel (0) target = $region9
    $region8: #{tpu_custom_call.1} parent=1 // pred_region
      %20 = dma.done [#allocation3], 256
    $region9: #{tpu_custom_call.1} parent=1 // pred_fallthru
      _
    %v21 = vld [vmem:[#allocation2] sm:$0xff]
    %v22 = vld [vmem:[#allocation2 + $0x8] sm:$0xff]
    %v23 = vmul.f32 %v21, 0.5
    %v24 = vmul.f32 %v22, 0.5
    %v25 = vtanh.pop %v23
    %v26 = vtanh.pop %v24
    %v27 = vadd.f32 %v25, 1.0
    %v28 = vadd.f32 %v26, 1.0
    %v29 = vmul.f32 %v23, %v27
    %v30 = vmul.f32 %v24, %v28
    %31 = vst [vmem:[#allocation5] sm:$0xff] %v29
    %32 = vst [vmem:[#allocation5 + $0x8] sm:$0xff] %v30
    // Predicated region
    $region10: #{tpu_custom_call.1} parent=1 // pred_check
      _
    $region11: #{tpu_custom_call.1} parent=1 // pred_check_branch
      %34 = sbr.rel (0) target = $region13
    $region12: #{tpu_custom_call.1} parent=1 // pred_region
      %s36 = ssub.s32 256, 256
      %37 = vsyncadd [#allocation4], %s36
      %s39 = sshll.u32 [#allocation5], 4
      %s40 = int_to_ptr.vmem [resolvable:$true] %s39
      %42 = dma.vmem_to_hbm [thread:$0]  %s40, 256, %s1, [#allocation4]
    $region13: #{tpu_custom_call.1} parent=1 // pred_fallthru
      _
    // Predicated region
    $region14: #{tpu_custom_call.1} parent=1 // pred_check
      _
    $region15: #{tpu_custom_call.1} parent=1 // pred_check_branch
      %44 = sbr.rel (0) target = $region17
    $region16: #{tpu_custom_call.1} parent=1 // pred_region
      %45 = dma.done [#allocation4], 256
    $region17: #{tpu_custom_call.1} parent=1 // pred_fallthru
      _
    %46 = vsyncpa [#allocation3], 1
    %47 = vsyncpa [#allocation4], 1

</llo_original>
